<compile_context>
chip_gen: v6e
topology: v6e:2x2x1
jax: 0.10.0
libtpu: 0.0.40
codegen_flags: <defaults>
</compile_context>

<pallas_src>
import functools

import jax
import jax.numpy as jnp
import numpy as np
from jax.experimental import pallas as pl
from jax.experimental.pallas import tpu as pltpu

_LANE = 128  # TPU lane width


def _round_up(n, m):
    return ((n + m - 1) // m) * m


def _mlp_kernel(x_ref, w1_ref, b1_ref, w2_ref, b2_ref, w3_ref, b3_ref, o_ref):
    # x arrives in f32 (read once from HBM); cast to bf16 in-kernel just before
    # the MXU dot -- free VPU work hidden under the x-tile DMA.
    x = x_ref[...].astype(jnp.bfloat16)

    # Layer 1: Linear(input_dim, 128) + ReLU  (bf16 operands, f32 accumulate)
    h1 = jnp.dot(x, w1_ref[...], preferred_element_type=jnp.float32)
    h1 = jnp.maximum(h1 + b1_ref[...], 0.0)

    # Layer 2: Linear(128, 64) + ReLU
    h2 = jnp.dot(h1.astype(jnp.bfloat16), w2_ref[...],
                 preferred_element_type=jnp.float32)
    h2 = jnp.maximum(h2 + b2_ref[...], 0.0)                 # (tm, 64) f32

    # Layer 3: Linear(64, 1) as multiply + cross-lane reduce on a lane-compacted
    # view: split the batch-tile rows into (tm//128, 128) so the logits land in
    # a dense lane layout (single major-dim split, tile-aligned).
    tm, h2dim = h2.shape
    h2c = h2.reshape(tm // _LANE, _LANE, h2dim)             # (tm//128, 128, 64)
    logit = jnp.sum(h2c * w3_ref[...], axis=-1) + b3_ref[...]   # (tm//128, 128)

    # Exact sigmoid on the compact block (only tm/1024 vregs -> essentially free).
    o_ref[0] = (1.0 / (1.0 + jnp.exp(-logit))).astype(o_ref.dtype)


def _vmem_budget_bytes():
    """Per-generation scoped-VMEM budget (v7x: 64 MiB physical, v5e/v6e: 128 MiB)."""
    try:
        physical = pltpu.get_tpu_info().vmem_capacity_bytes
    except Exception:
        physical = 64 * 1024 * 1024  # conservative fallback: assume v7x
    return min(int(physical * 3 // 4), 100 * 1024 * 1024)


def _choose_tiles(batch, input_dim, hidden1, hidden2, vmem_budget, tm_cap_max):
    """Pick batch-tile size tm (multiple of 128) from the VMEM budget, keeping
    batch padding waste small (< 128 rows per tile)."""
    # Resident weights/biases (assume the pipeliner double-buffers them).
    weight_bytes = 2 * (input_dim * hidden1 * 2 + hidden1 * hidden2 * 2
                        + (hidden1 + hidden2 + hidden2 + 1) * 4)
    # Per-row VMEM: double-buffered f32 x tile + in-kernel bf16 copy, f32/bf16
    # h1 and f32 h2 intermediates, double-buffered compact f32 output.
    per_row = (2 * input_dim * 4 + input_dim * 2
               + hidden1 * (4 + 2) + hidden2 * 4 + 2 * 4)
    avail = max(vmem_budget - weight_bytes, per_row * _LANE)
    tm_cap = max(((avail // per_row) // _LANE) * _LANE, _LANE)
    tm_cap = min(tm_cap, max((tm_cap_max // _LANE) * _LANE, _LANE))
    # TODO(synk): for very large input_dim (e.g. 10k+ TF-IDF features) w1 plus a
    # 128-row x tile may still exceed VMEM; that regime needs a K-tiled layer 1.

    padded = _round_up(max(batch, _LANE), _LANE)
    num_tiles = pl.cdiv(padded, tm_cap)
    tm = _round_up(pl.cdiv(padded, num_tiles), _LANE)
    return tm, num_tiles, tm * num_tiles


@functools.partial(jax.jit, static_argnames=("block_batch",))
def fake_news_classifier_forward(x, params, *, block_batch=2048):
    """x: (batch, input_dim) float32; params: dict of w1,b1,w2,b2,w3,b3."""
    batch, input_dim = x.shape
    w1, b1 = params["w1"], params["b1"]
    w2, b2 = params["w2"], params["b2"]
    w3, b3 = params["w3"], params["b3"]
    hidden1 = w1.shape[1]  # 128
    hidden2 = w2.shape[1]  # 64

    vmem_budget = _vmem_budget_bytes()
    tm, num_tiles, padded_batch = _choose_tiles(
        batch, input_dim, hidden1, hidden2, vmem_budget, block_batch)

    if padded_batch != batch:
        # Padded rows are zeros; each output row depends only on its own input
        # row, so the extra rows are simply sliced off below.
        x = jnp.pad(x, ((0, padded_batch - batch), (0, 0)))

    # Tiny weights: bf16 once in the wrapper (halves residency / HBM read).
    # Layer-3 weight/bias stay f32 (elementwise multiply + reduce in f32).
    w1c = w1.astype(jnp.bfloat16)
    w2c = w2.astype(jnp.bfloat16)
    w3r = w3.reshape(1, hidden2).astype(jnp.float32)   # (1, 64) row vector
    b3s = b3.reshape(1, 1).astype(jnp.float32)

    def resident(a):  # constant index_map -> fetched once, stays VMEM-resident
        return pl.BlockSpec(a.shape, lambda i: (0, 0))

    flops = 2 * padded_batch * (input_dim * hidden1
                                + hidden1 * hidden2
                                + hidden2)
    bytes_accessed = (padded_batch * input_dim * 4            # x, f32, read once
                      + w1c.size * 2 + w2c.size * 2
                      + (b1.size + b2.size + w3r.size + b3s.size) * 4
                      + padded_batch * 4)                      # compact f32 out
    cost = pl.CostEstimate(flops=flops,
                           transcendentals=padded_batch,
                           bytes_accessed=bytes_accessed)

    out = pl.pallas_call(
        _mlp_kernel,
        out_shape=jax.ShapeDtypeStruct((num_tiles, tm // _LANE, _LANE),
                                       jnp.float32),
        grid=(num_tiles,),
        in_specs=[pl.BlockSpec((tm, input_dim), lambda i: (i, 0)),
                  resident(w1c), resident(b1),
                  resident(w2c), resident(b2),
                  resident(w3r), resident(b3s)],
        out_specs=pl.BlockSpec((1, tm // _LANE, _LANE), lambda i: (i, 0, 0)),
        compiler_params=pltpu.CompilerParams(
            dimension_semantics=("parallel",),
            vmem_limit_bytes=vmem_budget),
        cost_estimate=cost,
    )(x, w1c, b1, w2c, b2, w3r, b3s)

    # (num_tiles, tm//128, 128) flattens to padded-batch row order.
    return out.reshape(padded_batch)[:batch, None]


def init_params(input_dim, key):
    """Deterministic init mimicking PyTorch nn.Linear default (+-1/sqrt(fan_in))."""
    dims = [(input_dim, 128), (128, 64), (64, 1)]
    params = {}
    keys = jax.random.split(key, 2 * len(dims))
    for i, (fan_in, fan_out) in enumerate(dims):
        bound = 1.0 / np.sqrt(fan_in)
        w = jax.random.uniform(keys[2 * i], (fan_in, fan_out),
                               minval=-bound, maxval=bound, dtype=jnp.float32)
        b = jax.random.uniform(keys[2 * i + 1], (1, fan_out),
                               minval=-bound, maxval=bound, dtype=jnp.float32)
        params[f"w{i + 1}"] = w
        params[f"b{i + 1}"] = b
    return params


def reference_forward(x, params):
    h1 = jnp.maximum(x @ params["w1"] + params["b1"], 0.0)
    h2 = jnp.maximum(h1 @ params["w2"] + params["b2"], 0.0)
    return jax.nn.sigmoid(h2 @ params["w3"] + params["b3"])


if __name__ == "__main__":
    key = jax.random.PRNGKey(0)
    k_params, k_x = jax.random.split(key)

    batch, input_dim = 8, 32
    params = init_params(input_dim, k_params)
    x = jax.random.normal(k_x, (batch, input_dim), dtype=jnp.float32)

    out = fake_news_classifier_forward(x, params)
    out = jax.block_until_ready(out)

    ref = reference_forward(x, params)
    # bf16 matmul operands on layers 1-2 -> relaxed tolerance; sigmoid is exact.
    np.testing.assert_allclose(np.asarray(out), np.asarray(ref),
                               rtol=0.0, atol=2e-2)
    assert out.shape == (batch, 1)
    print("KERNEL_OK")
</pallas_src>

<mosaic_0001>
module attributes {stable_mosaic.version = 11 : i64} {
  func.func @_mlp_kernel(%arg0: i32, %arg1: memref<128x32xf32, #tpu.memory_space<vmem>>, %arg2: memref<32x128xbf16, #tpu.memory_space<vmem>>, %arg3: memref<1x128xf32, #tpu.memory_space<vmem>>, %arg4: memref<128x64xbf16, #tpu.memory_space<vmem>>, %arg5: memref<1x64xf32, #tpu.memory_space<vmem>>, %arg6: memref<1x64xf32, #tpu.memory_space<vmem>>, %arg7: memref<1x1xf32, #tpu.memory_space<vmem>>, %arg8: memref<1x1x128xf32, #tpu.memory_space<vmem>>) attributes {dimension_semantics = [#tpu.dimension_semantics<parallel>], iteration_bounds = array<i64: 1>, scalar_prefetch = 0 : i64, scratch_operands = 0 : i64, tpu.core_type = #tpu.core_type<tc>, window_params = [{transform_indices = @transform_0, window_bounds = array<i64: 128, 32>}, {pipeline_mode = #tpu.pipeline_mode<synchronous>, transform_indices = @transform_1, window_bounds = array<i64: 32, 128>}, {pipeline_mode = #tpu.pipeline_mode<synchronous>, transform_indices = @transform_2, window_bounds = array<i64: 1, 128>}, {pipeline_mode = #tpu.pipeline_mode<synchronous>, transform_indices = @transform_3, window_bounds = array<i64: 128, 64>}, {pipeline_mode = #tpu.pipeline_mode<synchronous>, transform_indices = @transform_4, window_bounds = array<i64: 1, 64>}, {pipeline_mode = #tpu.pipeline_mode<synchronous>, transform_indices = @transform_5, window_bounds = array<i64: 1, 64>}, {pipeline_mode = #tpu.pipeline_mode<synchronous>, transform_indices = @transform_6, window_bounds = array<i64: 1, 1>}, {transform_indices = @transform_7, window_bounds = array<i64: 1, 1, 128>}]} {
    %c0 = arith.constant 0 : index
    %c0_0 = arith.constant 0 : index
    %0 = vector.load %arg1[%c0, %c0_0] : memref<128x32xf32, #tpu.memory_space<vmem>>, vector<128x32xf32>
    %1 = arith.truncf %0 : vector<128x32xf32> to vector<128x32xbf16>
    %c0_1 = arith.constant 0 : index
    %c0_2 = arith.constant 0 : index
    %2 = vector.load %arg2[%c0_1, %c0_2] : memref<32x128xbf16, #tpu.memory_space<vmem>>, vector<32x128xbf16>
    %cst = arith.constant dense<0.000000e+00> : vector<128x128xf32>
    %3 = tpu.matmul %1, %2, %cst {dimension_numbers = #tpu.dot_dimension_numbers<[1], [0], [0], [1], [0, 0, 1, 1], [], []>} : vector<128x32xbf16>, vector<32x128xbf16>, vector<128x128xf32> -> vector<128x128xf32>
    %c0_3 = arith.constant 0 : index
    %c0_4 = arith.constant 0 : index
    %4 = vector.load %arg3[%c0_3, %c0_4] : memref<1x128xf32, #tpu.memory_space<vmem>>, vector<1x128xf32>
    %5 = vector.broadcast %4 : vector<1x128xf32> to vector<128x128xf32>
    %6 = arith.addf %3, %5 : vector<128x128xf32>
    %cst_5 = arith.constant 0.000000e+00 : f32
    %7 = vector.broadcast %cst_5 : f32 to vector<128x128xf32>
    %8 = arith.maximumf %6, %7 : vector<128x128xf32>
    %9 = arith.truncf %8 : vector<128x128xf32> to vector<128x128xbf16>
    %c0_6 = arith.constant 0 : index
    %c0_7 = arith.constant 0 : index
    %10 = vector.load %arg4[%c0_6, %c0_7] : memref<128x64xbf16, #tpu.memory_space<vmem>>, vector<128x64xbf16>
    %cst_8 = arith.constant dense<0.000000e+00> : vector<128x64xf32>
    %11 = tpu.matmul %9, %10, %cst_8 {dimension_numbers = #tpu.dot_dimension_numbers<[1], [0], [0], [1], [0, 0, 1, 1], [], []>} : vector<128x128xbf16>, vector<128x64xbf16>, vector<128x64xf32> -> vector<128x64xf32>
    %c0_9 = arith.constant 0 : index
    %c0_10 = arith.constant 0 : index
    %12 = vector.load %arg5[%c0_9, %c0_10] : memref<1x64xf32, #tpu.memory_space<vmem>>, vector<1x64xf32>
    %13 = vector.broadcast %12 : vector<1x64xf32> to vector<128x64xf32>
    %14 = arith.addf %11, %13 : vector<128x64xf32>
    %cst_11 = arith.constant 0.000000e+00 : f32
    %15 = vector.broadcast %cst_11 : f32 to vector<128x64xf32>
    %16 = arith.maximumf %14, %15 : vector<128x64xf32>
    %17 = vector.shape_cast %16 : vector<128x64xf32> to vector<1x128x64xf32>
    %c0_12 = arith.constant 0 : index
    %c0_13 = arith.constant 0 : index
    %18 = vector.load %arg6[%c0_12, %c0_13] : memref<1x64xf32, #tpu.memory_space<vmem>>, vector<1x64xf32>
    %19 = vector.shape_cast %18 : vector<1x64xf32> to vector<1x1x64xf32>
    %20 = vector.broadcast %19 : vector<1x1x64xf32> to vector<1x128x64xf32>
    %21 = arith.mulf %17, %20 : vector<1x128x64xf32>
    %cst_14 = arith.constant dense<0.000000e+00> : vector<1x128xf32>
    %22 = vector.multi_reduction <add>, %21, %cst_14 [2] : vector<1x128x64xf32> to vector<1x128xf32>
    %c0_15 = arith.constant 0 : index
    %c0_16 = arith.constant 0 : index
    %23 = vector.load %arg7[%c0_15, %c0_16] : memref<1x1xf32, #tpu.memory_space<vmem>>, vector<1x1xf32>
    %24 = vector.broadcast %23 : vector<1x1xf32> to vector<1x128xf32>
    %25 = arith.addf %22, %24 : vector<1x128xf32>
    %cst_17 = arith.constant 0.000000e+00 : f32
    %26 = vector.broadcast %cst_17 : f32 to vector<1x128xf32>
    %27 = arith.subf %26, %25 : vector<1x128xf32>
    %28 = math.exp %27 : vector<1x128xf32>
    %cst_18 = arith.constant 1.000000e+00 : f32
    %29 = vector.broadcast %cst_18 : f32 to vector<1x128xf32>
    %30 = arith.addf %29, %28 : vector<1x128xf32>
    %cst_19 = arith.constant 1.000000e+00 : f32
    %31 = vector.broadcast %cst_19 : f32 to vector<1x128xf32>
    %32 = arith.divf %31, %30 : vector<1x128xf32>
    %c0_20 = arith.constant 0 : index
    %c0_21 = arith.constant 0 : index
    %c0_22 = arith.constant 0 : index
    %33 = vector.load %arg8[%c0_20, %c0_21, %c0_22] : memref<1x1x128xf32, #tpu.memory_space<vmem>>, vector<1x1x128xf32>
    %34 = vector.shape_cast %33 : vector<1x1x128xf32> to vector<1x128xf32>
    %35 = vector.shape_cast %32 : vector<1x128xf32> to vector<1x1x128xf32>
    tpu.vector_store %arg8[%c0_20, %c0_21, %c0_22], %35 {strides = array<i32>} : memref<1x1x128xf32, #tpu.memory_space<vmem>>, vector<1x1x128xf32>,
    return
  }
  func.func @transform_0(%arg0: i32) -> (i32, i32) {
    %c0_i32 = arith.constant 0 : i32
    %c0_i32_0 = arith.constant 0 : i32
    return %arg0, %c0_i32 : i32, i32
  }
  func.func @transform_1(%arg0: i32) -> (i32, i32) {
    %c0_i32 = arith.constant 0 : i32
    %c0_i32_0 = arith.constant 0 : i32
    %c0_i32_1 = arith.constant 0 : i32
    return %c0_i32, %c0_i32_0 : i32, i32
  }
  func.func @transform_2(%arg0: i32) -> (i32, i32) {
    %c0_i32 = arith.constant 0 : i32
    %c0_i32_0 = arith.constant 0 : i32
    %c0_i32_1 = arith.constant 0 : i32
    return %c0_i32, %c0_i32_0 : i32, i32
  }
  func.func @transform_3(%arg0: i32) -> (i32, i32) {
    %c0_i32 = arith.constant 0 : i32
    %c0_i32_0 = arith.constant 0 : i32
    %c0_i32_1 = arith.constant 0 : i32
    return %c0_i32, %c0_i32_0 : i32, i32
  }
  func.func @transform_4(%arg0: i32) -> (i32, i32) {
    %c0_i32 = arith.constant 0 : i32
    %c0_i32_0 = arith.constant 0 : i32
    %c0_i32_1 = arith.constant 0 : i32
    return %c0_i32, %c0_i32_0 : i32, i32
  }
  func.func @transform_5(%arg0: i32) -> (i32, i32) {
    %c0_i32 = arith.constant 0 : i32
    %c0_i32_0 = arith.constant 0 : i32
    %c0_i32_1 = arith.constant 0 : i32
    return %c0_i32, %c0_i32_0 : i32, i32
  }
  func.func @transform_6(%arg0: i32) -> (i32, i32) {
    %c0_i32 = arith.constant 0 : i32
    %c0_i32_0 = arith.constant 0 : i32
    %c0_i32_1 = arith.constant 0 : i32
    return %c0_i32, %c0_i32_0 : i32, i32
  }
  func.func @transform_7(%arg0: i32) -> (i32, i32, i32) {
    %c0_i32 = arith.constant 0 : i32
    %c0_i32_0 = arith.constant 0 : i32
    %c0_i32_1 = arith.constant 0 : i32
    return %arg0, %c0_i32, %c0_i32_0 : i32, i32, i32
  }
}

</mosaic_0001>

<llo_original>
// kernel: fake_news_classifier_forward.1
$region0: #{fake_news_classifier_forward.1}
  #allocation0 [shape = 'u32[]', space=smem, size = 0x4, offset = 0x4, fixed_abs, tag = 'smem constant byte address 0x4 - core index']
  #allocation1 [shape = 'u32[144,128]{1,0:T(1,128)}', space=vmem, size = 0x12000, scoped, tag = 'internal scratch']
  #allocation2 [shape = 'f32[1,1]{1,0:T(1,128)S(1)}', space=vmem, size = 0x200, scoped, tag = 'scoped memory for fake_news_classifier_forward.1']
  %s0 = inlined_call_operand.vmem [shape: f32[128,32], index: 0, kind: input, shape index: {}]
  %s1 = inlined_call_operand.vmem [shape: bf16[32,128], index: 1, kind: input, shape index: {}]
  %s2 = inlined_call_operand.vmem [shape: f32[1,128], index: 2, kind: input, shape index: {}]
  %s3 = inlined_call_operand.vmem [shape: bf16[128,64], index: 3, kind: input, shape index: {}]
  %s4 = inlined_call_operand.vmem [shape: f32[1,64], index: 4, kind: input, shape index: {}]
  %s5 = inlined_call_operand.vmem [shape: f32[1,64], index: 5, kind: input, shape index: {}]
  %s6 = inlined_call_operand.<no memory space> [shape: f32[1,1], index: 6, kind: input, shape index: {}]
  %s7 = inlined_call_operand.vmem [shape: f32[1,1,128], index: 7, kind: output, shape index: {}]
  %s8 = sld [smem:[#allocation0]]
  $region38: #{fake_news_classifier_forward.1} parent=0
    _
  %s10 = ssub.s32 1, %s8
  %s11 = scalar_select 0, %s10, %s8
  %v12 = vstv %s6
  %13 = vst [vmem:[#allocation2] sm:$0x1] %v12
  // Predicated region
  $region2: #{fake_news_classifier_forward.1} parent=0 // pred_check
    _
  $region3: #{fake_news_classifier_forward.1} parent=0 // pred_check_branch
    %15 = sbr.rel (0) target = $region5
  $region4: #{fake_news_classifier_forward.1} parent=0 // pred_region
    _
  $region5: #{fake_news_classifier_forward.1} parent=0 // pred_fallthru
    _
  // Predicated region
  $region6: #{fake_news_classifier_forward.1} parent=0 // pred_check
    _
  $region7: #{fake_news_classifier_forward.1} parent=0 // pred_check_branch
    %17 = sbr.rel (0) target = $region9
  $region8: #{fake_news_classifier_forward.1} parent=0 // pred_region
    _
  $region9: #{fake_news_classifier_forward.1} parent=0 // pred_fallthru
    _
  // Predicated region
  $region10: #{fake_news_classifier_forward.1} parent=0 // pred_check
    _
  $region11: #{fake_news_classifier_forward.1} parent=0 // pred_check_branch
    %19 = sbr.rel (0) target = $region13
  $region12: #{fake_news_classifier_forward.1} parent=0 // pred_region
    _
  $region13: #{fake_news_classifier_forward.1} parent=0 // pred_fallthru
    _
  // Predicated region
  $region14: #{fake_news_classifier_forward.1} parent=0 // pred_check
    _
  $region15: #{fake_news_classifier_forward.1} parent=0 // pred_check_branch
    %21 = sbr.rel (0) target = $region17
  $region16: #{fake_news_classifier_forward.1} parent=0 // pred_region
    _
  $region17: #{fake_news_classifier_forward.1} parent=0 // pred_fallthru
    _
  // Predicated region
  $region18: #{fake_news_classifier_forward.1} parent=0 // pred_check
    _
  $region19: #{fake_news_classifier_forward.1} parent=0 // pred_check_branch
    %23 = sbr.rel (0) target = $region21
  $region20: #{fake_news_classifier_forward.1} parent=0 // pred_region
    _
  $region21: #{fake_news_classifier_forward.1} parent=0 // pred_fallthru
    _
  // Predicated region
  $region22: #{fake_news_classifier_forward.1} parent=0 // pred_check
    _
  $region23: #{fake_news_classifier_forward.1} parent=0 // pred_check_branch
    %25 = sbr.rel (0) target = $region25
  $region24: #{fake_news_classifier_forward.1} parent=0 // pred_region
    _
  $region25: #{fake_news_classifier_forward.1} parent=0 // pred_fallthru
    _
  // Predicated region
  $region26: #{fake_news_classifier_forward.1} parent=0 // pred_check
    _
  $region27: #{fake_news_classifier_forward.1} parent=0 // pred_check_branch
    %27 = sbr.rel (0) target = $region29
  $region28: #{fake_news_classifier_forward.1} parent=0 // pred_region
    _
  $region29: #{fake_news_classifier_forward.1} parent=0 // pred_fallthru
    _
  %v29 = vld [vmem:[%s0] sm:$0xff]
  %v30 = vld [vmem:[%s0 + $0x8] sm:$0xff]
  %v31 = vld [vmem:[%s0 + $0x10] sm:$0xff]
  %v32 = vld [vmem:[%s0 + $0x18] sm:$0xff]
  %v33 = vld [vmem:[%s0 + $0x20] sm:$0xff]
  %v34 = vld [vmem:[%s0 + $0x28] sm:$0xff]
  %v35 = vld [vmem:[%s0 + $0x30] sm:$0xff]
  %v36 = vld [vmem:[%s0 + $0x38] sm:$0xff]
  %v37 = vld [vmem:[%s0 + $0x40] sm:$0xff]
  %v38 = vld [vmem:[%s0 + $0x48] sm:$0xff]
  %v39 = vld [vmem:[%s0 + $0x50] sm:$0xff]
  %v40 = vld [vmem:[%s0 + $0x58] sm:$0xff]
  %v41 = vld [vmem:[%s0 + $0x60] sm:$0xff]
  %v42 = vld [vmem:[%s0 + $0x68] sm:$0xff]
  %v43 = vld [vmem:[%s0 + $0x70] sm:$0xff]
  %v44 = vld [vmem:[%s0 + $0x78] sm:$0xff]
  %v45 = vpack.c.bf16 %v30, %v29
  %v46 = vpack.c.bf16 %v32, %v31
  %v47 = vpack.c.bf16 %v34, %v33
  %v48 = vpack.c.bf16 %v36, %v35
  %v49 = vpack.c.bf16 %v38, %v37
  %v50 = vpack.c.bf16 %v40, %v39
  %v51 = vpack.c.bf16 %v42, %v41
  %v52 = vpack.c.bf16 %v44, %v43
  %v53 = vld [vmem:[%s1] sm:$0xf]
  %v54 = vld [vmem:[%s1 + $0x4] sm:$0xf]
  %v55 = vld [vmem:[%s1 + $0x8] sm:$0xf]
  %v56 = vld [vmem:[%s1 + $0xc] sm:$0xf]
  %v57 = vld [vmem:[%s2] sm:$0x1]
  %v59 = vlaneseq
  %v60 = vshrl.u32 %v59, 7
  %v61 = vsub.s32 0, %v60
  %v62 = vrot.slane %v57, %v61
  %v68 = vunpack.c.l.b16 %v53
  %v69 = vunpack.c.l.b16 %v54
  %v70 = vunpack.c.l.b16 %v55
  %v71 = vunpack.c.l.b16 %v56
  %v72 = vpack.c.b16 %v69, %v68
  %v73 = vpack.c.b16 %v71, %v70
  %vm76 = vcmask 261120
  %v78 = vsel %vm76, %v45, 0
  %v81 = vsel %vm76, %v46, 0
  %v84 = vsel %vm76, %v47, 0
  %v87 = vsel %vm76, %v48, 0
  %v90 = vsel %vm76, %v49, 0
  %v93 = vsel %vm76, %v50, 0
  %v96 = vsel %vm76, %v51, 0
  %v99 = vsel %vm76, %v52, 0
  %101 = vmatprep.subr.bf16.mxu0 0
  %102 = vmatpush1.bf16.msra.mxu0 0
  %103 = vmatprep.subr.bf16.mxu0 0
  %104 = vmatpush1.bf16.msra.mxu0 0
  %105 = vmatprep.subr.bf16.mxu0 0
  %106 = vmatpush1.bf16.msra.mxu0 0
  %107 = vmatprep.subr.bf16.mxu0 0
  %108 = vmatpush1.bf16.msra.mxu0 0
  %109 = vmatprep.subr.bf16.mxu0 0
  %110 = vmatpush1.bf16.msra.mxu0 0
  %111 = vmatprep.subr.bf16.mxu0 0
  %112 = vmatpush1.bf16.msra.mxu0 0
  %113 = vmatprep.subr.bf16.mxu0 0
  %114 = vmatpush1.bf16.msra.mxu0 %v73
  %115 = vmatprep.subr.bf16.mxu0 0
  %116 = vmatpush1.bf16.msra.mxu0 %v72
  %117 = vmatprep.subr.bf16.mxu0 0
  %118 = vmatpush2.bf16.msra.mxu0 0
  %119 = vmatprep.subr.bf16.mxu0 0
  %120 = vmatpush2.bf16.msra.mxu0 0
  %121 = vmatprep.subr.bf16.mxu0 0
  %122 = vmatpush2.bf16.msra.mxu0 0
  %123 = vmatprep.subr.bf16.mxu0 0
  %124 = vmatpush2.bf16.msra.mxu0 0
  %125 = vmatprep.subr.bf16.mxu0 0
  %126 = vmatpush2.bf16.msra.mxu0 0
  %127 = vmatprep.subr.bf16.mxu0 0
  %128 = vmatpush2.bf16.msra.mxu0 0
  %129 = vmatprep.subr.bf16.mxu0 0
  %130 = vmatpush2.bf16.msra.mxu0 0
  %131 = vmatprep.subr.bf16.mxu0 0
  %132 = vmatpush2.bf16.msra.mxu0 0
  %133 = vmatprep.mubr.bf16.mxu0 0
  %134 = vmatmul.mubr.bf16.gmra.mxu0 %v78
  %v135 = vpop.f32.mrf.mxu0
  %v136 = vadd.f32 %v62, %v135
  %v137 = vpop.f32.mrf.mxu0
  %v138 = vpop.f32.mrf.mxu0
  %v139 = vadd.f32 %v62, %v138
  %v140 = vpop.f32.mrf.mxu0
  %141 = vmatprep.mubr.bf16.mxu0 0
  %142 = vmatmul.mubr.bf16.gmra.mxu0 %v81
  %v143 = vpop.f32.mrf.mxu0
  %v144 = vadd.f32 %v62, %v143
  %v145 = vpop.f32.mrf.mxu0
  %v146 = vpop.f32.mrf.mxu0
  %v147 = vadd.f32 %v62, %v146
  %v148 = vpop.f32.mrf.mxu0
  %149 = vmatprep.mubr.bf16.mxu0 0
  %150 = vmatmul.mubr.bf16.gmra.mxu0 %v84
  %v151 = vpop.f32.mrf.mxu0
  %v152 = vadd.f32 %v62, %v151
  %v153 = vpop.f32.mrf.mxu0
  %v154 = vpop.f32.mrf.mxu0
  %v155 = vadd.f32 %v62, %v154
  %v156 = vpop.f32.mrf.mxu0
  %157 = vmatprep.mubr.bf16.mxu0 0
  %158 = vmatmul.mubr.bf16.gmra.mxu0 %v87
  %v159 = vpop.f32.mrf.mxu0
  %v160 = vadd.f32 %v62, %v159
  %v161 = vpop.f32.mrf.mxu0
  %v162 = vpop.f32.mrf.mxu0
  %v163 = vadd.f32 %v62, %v162
  %v164 = vpop.f32.mrf.mxu0
  %165 = vmatprep.mubr.bf16.mxu0 0
  %166 = vmatmul.mubr.bf16.gmra.mxu0 %v90
  %v167 = vpop.f32.mrf.mxu0
  %v168 = vadd.f32 %v62, %v167
  %v169 = vpop.f32.mrf.mxu0
  %v170 = vpop.f32.mrf.mxu0
  %v171 = vadd.f32 %v62, %v170
  %v172 = vpop.f32.mrf.mxu0
  %173 = vmatprep.mubr.bf16.mxu0 0
  %174 = vmatmul.mubr.bf16.gmra.mxu0 %v93
  %v175 = vpop.f32.mrf.mxu0
  %v176 = vadd.f32 %v62, %v175
  %v177 = vpop.f32.mrf.mxu0
  %v178 = vpop.f32.mrf.mxu0
  %v179 = vadd.f32 %v62, %v178
  %v180 = vpop.f32.mrf.mxu0
  %181 = vmatprep.mubr.bf16.mxu0 0
  %182 = vmatmul.mubr.bf16.gmra.mxu0 %v96
  %v183 = vpop.f32.mrf.mxu0
  %v184 = vadd.f32 %v62, %v183
  %v185 = vpop.f32.mrf.mxu0
  %v186 = vpop.f32.mrf.mxu0
  %v187 = vadd.f32 %v62, %v186
  %v188 = vpop.f32.mrf.mxu0
  %189 = vmatprep.mubr.bf16.mxu0 0
  %190 = vmatmul.mubr.bf16.gmra.mxu0 %v99
  %v191 = vpop.f32.mrf.mxu0
  %v192 = vadd.f32 %v62, %v191
  %v193 = vpop.f32.mrf.mxu0
  %v194 = vpop.f32.mrf.mxu0
  %v195 = vadd.f32 %v62, %v194
  %v196 = vpop.f32.mrf.mxu0
  %197 = vdwg.mxu0
  %v198 = vmax.f32 %v136, 0.0
  %v199 = vmax.f32 %v139, 0.0
  %v200 = vmax.f32 %v144, 0.0
  %v201 = vmax.f32 %v147, 0.0
  %v202 = vmax.f32 %v152, 0.0
  %v203 = vmax.f32 %v155, 0.0
  %v204 = vmax.f32 %v160, 0.0
  %v205 = vmax.f32 %v163, 0.0
  %v206 = vmax.f32 %v168, 0.0
  %v207 = vmax.f32 %v171, 0.0
  %v208 = vmax.f32 %v176, 0.0
  %v209 = vmax.f32 %v179, 0.0
  %v210 = vmax.f32 %v184, 0.0
  %v211 = vmax.f32 %v187, 0.0
  %v212 = vmax.f32 %v192, 0.0
  %v213 = vmax.f32 %v195, 0.0
  %v214 = vpack.c.bf16 %v199, %v198
  %v215 = vpack.c.bf16 %v201, %v200
  %v216 = vpack.c.bf16 %v203, %v202
  %v217 = vpack.c.bf16 %v205, %v204
  %v218 = vpack.c.bf16 %v207, %v206
  %v219 = vpack.c.bf16 %v209, %v208
  %v220 = vpack.c.bf16 %v211, %v210
  %v221 = vpack.c.bf16 %v213, %v212
  %v222 = vld [vmem:[%s3] sm:$0xf]
  %v223 = vld [vmem:[%s3 + $0x4] sm:$0xf]
  %v224 = vld [vmem:[%s3 + $0x8] sm:$0xf]
  %v225 = vld [vmem:[%s3 + $0xc] sm:$0xf]
  %v226 = vld [vmem:[%s3 + $0x10] sm:$0xf]
  %v227 = vld [vmem:[%s3 + $0x14] sm:$0xf]
  %v228 = vld [vmem:[%s3 + $0x18] sm:$0xf]
  %v229 = vld [vmem:[%s3 + $0x1c] sm:$0xf]
  %v230 = vld [vmem:[%s3 + $0x20] sm:$0xf]
  %v231 = vld [vmem:[%s3 + $0x24] sm:$0xf]
  %v232 = vld [vmem:[%s3 + $0x28] sm:$0xf]
  %v233 = vld [vmem:[%s3 + $0x2c] sm:$0xf]
  %v234 = vld [vmem:[%s3 + $0x30] sm:$0xf]
  %v235 = vld [vmem:[%s3 + $0x34] sm:$0xf]
  %v236 = vld [vmem:[%s3 + $0x38] sm:$0xf]
  %v237 = vld [vmem:[%s3 + $0x3c] sm:$0xf]
  %v238 = vld [vmem:[%s4] sm:$0x1]
  %v240 = vlaneseq
  %v241 = vshrl.u32 %v240, 7
  %v242 = vsub.s32 0, %v241
  %v243 = vrot.slane %v238, %v242
  %v261 = vunpack.c.l.b16 %v222
  %v262 = vunpack.c.l.b16 %v223
  %v263 = vunpack.c.l.b16 %v224
  %v264 = vunpack.c.l.b16 %v225
  %v265 = vunpack.c.l.b16 %v226
  %v266 = vunpack.c.l.b16 %v227
  %v267 = vunpack.c.l.b16 %v228
  %v268 = vunpack.c.l.b16 %v229
  %v269 = vunpack.c.l.b16 %v230
  %v270 = vunpack.c.l.b16 %v231
  %v271 = vunpack.c.l.b16 %v232
  %v272 = vunpack.c.l.b16 %v233
  %v273 = vunpack.c.l.b16 %v234
  %v274 = vunpack.c.l.b16 %v235
  %v275 = vunpack.c.l.b16 %v236
  %v276 = vunpack.c.l.b16 %v237
  %v277 = vpack.c.b16 %v262, %v261
  %v278 = vpack.c.b16 %v264, %v263
  %v279 = vpack.c.b16 %v266, %v265
  %v280 = vpack.c.b16 %v268, %v267
  %v281 = vpack.c.b16 %v270, %v269
  %v282 = vpack.c.b16 %v272, %v271
  %v283 = vpack.c.b16 %v274, %v273
  %v284 = vpack.c.b16 %v276, %v275
  %293 = vmatprep.subr.bf16.mxu0 0
  %294 = vmatpush1.bf16.msra.mxu0 %v284
  %295 = vmatprep.subr.bf16.mxu0 0
  %296 = vmatpush1.bf16.msra.mxu0 %v283
  %297 = vmatprep.subr.bf16.mxu0 0
  %298 = vmatpush1.bf16.msra.mxu0 %v282
  %299 = vmatprep.subr.bf16.mxu0 0
  %300 = vmatpush1.bf16.msra.mxu0 %v281
  %301 = vmatprep.subr.bf16.mxu0 0
  %302 = vmatpush1.bf16.msra.mxu0 %v280
  %303 = vmatprep.subr.bf16.mxu0 0
  %304 = vmatpush1.bf16.msra.mxu0 %v279
  %305 = vmatprep.subr.bf16.mxu0 0
  %306 = vmatpush1.bf16.msra.mxu0 %v278
  %307 = vmatprep.subr.bf16.mxu0 0
  %308 = vmatpush1.bf16.msra.mxu0 %v277
  %309 = vmatprep.subr.bf16.mxu0 0
  %310 = vmatpush2.bf16.msra.mxu0 0
  %311 = vmatprep.subr.bf16.mxu0 0
  %312 = vmatpush2.bf16.msra.mxu0 0
  %313 = vmatprep.subr.bf16.mxu0 0
  %314 = vmatpush2.bf16.msra.mxu0 0
  %315 = vmatprep.subr.bf16.mxu0 0
  %316 = vmatpush2.bf16.msra.mxu0 0
  %317 = vmatprep.subr.bf16.mxu0 0
  %318 = vmatpush2.bf16.msra.mxu0 0
  %319 = vmatprep.subr.bf16.mxu0 0
  %320 = vmatpush2.bf16.msra.mxu0 0
  %321 = vmatprep.subr.bf16.mxu0 0
  %322 = vmatpush2.bf16.msra.mxu0 0
  %323 = vmatprep.subr.bf16.mxu0 0
  %324 = vmatpush2.bf16.msra.mxu0 0
  %325 = vmatprep.mubr.bf16.mxu0 0
  %326 = vmatmul.mubr.bf16.gmra.mxu0 %v214
  %v327 = vpop.f32.mrf.mxu0
  %v328 = vadd.f32 %v243, %v327
  %v329 = vpop.f32.mrf.mxu0
  %v330 = vpop.f32.mrf.mxu0
  %v331 = vadd.f32 %v243, %v330
  %v332 = vpop.f32.mrf.mxu0
  %333 = vmatprep.mubr.bf16.mxu0 0
  %334 = vmatmul.mubr.bf16.gmra.mxu0 %v215
  %v335 = vpop.f32.mrf.mxu0
  %v336 = vadd.f32 %v243, %v335
  %v337 = vpop.f32.mrf.mxu0
  %v338 = vpop.f32.mrf.mxu0
  %v339 = vadd.f32 %v243, %v338
  %v340 = vpop.f32.mrf.mxu0
  %341 = vmatprep.mubr.bf16.mxu0 0
  %342 = vmatmul.mubr.bf16.gmra.mxu0 %v216
  %v343 = vpop.f32.mrf.mxu0
  %v344 = vadd.f32 %v243, %v343
  %v345 = vpop.f32.mrf.mxu0
  %v346 = vpop.f32.mrf.mxu0
  %v347 = vadd.f32 %v243, %v346
  %v348 = vpop.f32.mrf.mxu0
  %349 = vmatprep.mubr.bf16.mxu0 0
  %350 = vmatmul.mubr.bf16.gmra.mxu0 %v217
  %v351 = vpop.f32.mrf.mxu0
  %v352 = vadd.f32 %v243, %v351
  %v353 = vpop.f32.mrf.mxu0
  %v354 = vpop.f32.mrf.mxu0
  %v355 = vadd.f32 %v243, %v354
  %v356 = vpop.f32.mrf.mxu0
  %357 = vmatprep.mubr.bf16.mxu0 0
  %358 = vmatmul.mubr.bf16.gmra.mxu0 %v218
  %v359 = vpop.f32.mrf.mxu0
  %v360 = vadd.f32 %v243, %v359
  %v361 = vpop.f32.mrf.mxu0
  %v362 = vpop.f32.mrf.mxu0
  %v363 = vadd.f32 %v243, %v362
  %v364 = vpop.f32.mrf.mxu0
  %365 = vmatprep.mubr.bf16.mxu0 0
  %366 = vmatmul.mubr.bf16.gmra.mxu0 %v219
  %v367 = vpop.f32.mrf.mxu0
  %v368 = vadd.f32 %v243, %v367
  %v369 = vpop.f32.mrf.mxu0
  %v370 = vpop.f32.mrf.mxu0
  %v371 = vadd.f32 %v243, %v370
  %v372 = vpop.f32.mrf.mxu0
  %373 = vmatprep.mubr.bf16.mxu0 0
  %374 = vmatmul.mubr.bf16.gmra.mxu0 %v220
  %v375 = vpop.f32.mrf.mxu0
  %v376 = vadd.f32 %v243, %v375
  %v377 = vpop.f32.mrf.mxu0
  %v378 = vpop.f32.mrf.mxu0
  %v379 = vadd.f32 %v243, %v378
  %v380 = vpop.f32.mrf.mxu0
  %381 = vmatprep.mubr.bf16.mxu0 0
  %382 = vmatmul.mubr.bf16.gmra.mxu0 %v221
  %v383 = vpop.f32.mrf.mxu0
  %v384 = vadd.f32 %v243, %v383
  %v385 = vpop.f32.mrf.mxu0
  %v386 = vpop.f32.mrf.mxu0
  %v387 = vadd.f32 %v243, %v386
  %v388 = vpop.f32.mrf.mxu0
  %389 = vdwg.mxu0
  %v390 = vmax.f32 %v328, 0.0
  %v391 = vmax.f32 %v331, 0.0
  %v392 = vmax.f32 %v336, 0.0
  %v393 = vmax.f32 %v339, 0.0
  %v394 = vmax.f32 %v344, 0.0
  %v395 = vmax.f32 %v347, 0.0
  %v396 = vmax.f32 %v352, 0.0
  %v397 = vmax.f32 %v355, 0.0
  %v398 = vmax.f32 %v360, 0.0
  %v399 = vmax.f32 %v363, 0.0
  %v400 = vmax.f32 %v368, 0.0
  %v401 = vmax.f32 %v371, 0.0
  %v402 = vmax.f32 %v376, 0.0
  %v403 = vmax.f32 %v379, 0.0
  %v404 = vmax.f32 %v384, 0.0
  %v405 = vmax.f32 %v387, 0.0
  %v406 = vld [vmem:[%s5] sm:$0x1]
  %v408 = vlaneseq
  %v409 = vshrl.u32 %v408, 7
  %v410 = vsub.s32 0, %v409
  %v411 = vrot.slane %v406, %v410
  %v413 = vmul.f32 %v390, %v411
  %v414 = vmul.f32 %v391, %v411
  %v415 = vmul.f32 %v392, %v411
  %v416 = vmul.f32 %v393, %v411
  %v417 = vmul.f32 %v394, %v411
  %v418 = vmul.f32 %v395, %v411
  %v419 = vmul.f32 %v396, %v411
  %v420 = vmul.f32 %v397, %v411
  %v421 = vmul.f32 %v398, %v411
  %v422 = vmul.f32 %v399, %v411
  %v423 = vmul.f32 %v400, %v411
  %v424 = vmul.f32 %v401, %v411
  %v425 = vmul.f32 %v402, %v411
  %v426 = vmul.f32 %v403, %v411
  %v427 = vmul.f32 %v404, %v411
  %v428 = vmul.f32 %v405, %v411
  %vm429 = vcmask 523264
  %v430 = vsel %vm429, %v413, 0.0
  %431 = vadd.xlane.f32.xlu0 %v430
  %v432 = vpop.xlane.xlu0 %431
  %v433 = vsel %vm429, %v414, 0.0
  %434 = vadd.xlane.f32.xlu0 %v433
  %v435 = vpop.xlane.xlu0 %434
  %v436 = vsel %vm429, %v415, 0.0
  %437 = vadd.xlane.f32.xlu0 %v436
  %v438 = vpop.xlane.xlu0 %437
  %v439 = vsel %vm429, %v416, 0.0
  %440 = vadd.xlane.f32.xlu0 %v439
  %v441 = vpop.xlane.xlu0 %440
  %v442 = vsel %vm429, %v417, 0.0
  %443 = vadd.xlane.f32.xlu0 %v442
  %v444 = vpop.xlane.xlu0 %443
  %v445 = vsel %vm429, %v418, 0.0
  %446 = vadd.xlane.f32.xlu0 %v445
  %v447 = vpop.xlane.xlu0 %446
  %v448 = vsel %vm429, %v419, 0.0
  %449 = vadd.xlane.f32.xlu0 %v448
  %v450 = vpop.xlane.xlu0 %449
  %v451 = vsel %vm429, %v420, 0.0
  %452 = vadd.xlane.f32.xlu0 %v451
  %v453 = vpop.xlane.xlu0 %452
  %v454 = vsel %vm429, %v421, 0.0
  %455 = vadd.xlane.f32.xlu0 %v454
  %v456 = vpop.xlane.xlu0 %455
  %v457 = vsel %vm429, %v422, 0.0
  %458 = vadd.xlane.f32.xlu0 %v457
  %v459 = vpop.xlane.xlu0 %458
  %v460 = vsel %vm429, %v423, 0.0
  %461 = vadd.xlane.f32.xlu0 %v460
  %v462 = vpop.xlane.xlu0 %461
  %v463 = vsel %vm429, %v424, 0.0
  %464 = vadd.xlane.f32.xlu0 %v463
  %v465 = vpop.xlane.xlu0 %464
  %v466 = vsel %vm429, %v425, 0.0
  %467 = vadd.xlane.f32.xlu0 %v466
  %v468 = vpop.xlane.xlu0 %467
  %v469 = vsel %vm429, %v426, 0.0
  %470 = vadd.xlane.f32.xlu0 %v469
  %v471 = vpop.xlane.xlu0 %470
  %v472 = vsel %vm429, %v427, 0.0
  %473 = vadd.xlane.f32.xlu0 %v472
  %v474 = vpop.xlane.xlu0 %473
  %v475 = vsel %vm429, %v428, 0.0
  %476 = vadd.xlane.f32.xlu0 %v475
  %v477 = vpop.xlane.xlu0 %476
  %v478 = vld [vmem:[#allocation2] sm:$0x1]
  %480 = vset.pattern.permute.xlu0 0
  %481 = vperm.xlu0 %480, %v478
  %v482 = vpop.permute.xlu0 %481
  %v484 = vlaneseq
  %v485 = vshrl.u32 %v484, 7
  %v486 = vsub.s32 0, %v485
  %v487 = vrot.slane %v482, %v486
  %v488 = vadd.f32 %v432, %v487
  %v489 = vadd.f32 %v435, %v487
  %v490 = vadd.f32 %v438, %v487
  %v491 = vadd.f32 %v441, %v487
  %v492 = vadd.f32 %v444, %v487
  %v493 = vadd.f32 %v447, %v487
  %v494 = vadd.f32 %v450, %v487
  %v495 = vadd.f32 %v453, %v487
  %v496 = vadd.f32 %v456, %v487
  %v497 = vadd.f32 %v459, %v487
  %v498 = vadd.f32 %v462, %v487
  %v499 = vadd.f32 %v465, %v487
  %v500 = vadd.f32 %v468, %v487
  %v501 = vadd.f32 %v471, %v487
  %v502 = vadd.f32 %v474, %v487
  %v503 = vadd.f32 %v477, %v487
  %v504 = vsub.f32 0.0, %v488
  %v505 = vsub.f32 0.0, %v489
  %v506 = vsub.f32 0.0, %v490
  %v507 = vsub.f32 0.0, %v491
  %v508 = vsub.f32 0.0, %v492
  %v509 = vsub.f32 0.0, %v493
  %v510 = vsub.f32 0.0, %v494
  %v511 = vsub.f32 0.0, %v495
  %v512 = vsub.f32 0.0, %v496
  %v513 = vsub.f32 0.0, %v497
  %v514 = vsub.f32 0.0, %v498
  %v515 = vsub.f32 0.0, %v499
  %v516 = vsub.f32 0.0, %v500
  %v517 = vsub.f32 0.0, %v501
  %v518 = vsub.f32 0.0, %v502
  %v519 = vsub.f32 0.0, %v503
  %v520 = vmul.f32 %v504, 1.442695
  %v521 = vpow.pop %v520
  %v522 = vmul.f32 %v505, 1.442695
  %v523 = vpow.pop %v522
  %v524 = vmul.f32 %v506, 1.442695
  %v525 = vpow.pop %v524
  %v526 = vmul.f32 %v507, 1.442695
  %v527 = vpow.pop %v526
  %v528 = vmul.f32 %v508, 1.442695
  %v529 = vpow.pop %v528
  %v530 = vmul.f32 %v509, 1.442695
  %v531 = vpow.pop %v530
  %v532 = vmul.f32 %v510, 1.442695
  %v533 = vpow.pop %v532
  %v534 = vmul.f32 %v511, 1.442695
  %v535 = vpow.pop %v534
  %v536 = vmul.f32 %v512, 1.442695
  %v537 = vpow.pop %v536
  %v538 = vmul.f32 %v513, 1.442695
  %v539 = vpow.pop %v538
  %v540 = vmul.f32 %v514, 1.442695
  %v541 = vpow.pop %v540
  %v542 = vmul.f32 %v515, 1.442695
  %v543 = vpow.pop %v542
  %v544 = vmul.f32 %v516, 1.442695
  %v545 = vpow.pop %v544
  %v546 = vmul.f32 %v517, 1.442695
  %v547 = vpow.pop %v546
  %v548 = vmul.f32 %v518, 1.442695
  %v549 = vpow.pop %v548
  %v550 = vmul.f32 %v519, 1.442695
  %v551 = vpow.pop %v550
  %v552 = vadd.f32 %v521, 1.0
  %v553 = vadd.f32 %v523, 1.0
  %v554 = vadd.f32 %v525, 1.0
  %v555 = vadd.f32 %v527, 1.0
  %v556 = vadd.f32 %v529, 1.0
  %v557 = vadd.f32 %v531, 1.0
  %v558 = vadd.f32 %v533, 1.0
  %v559 = vadd.f32 %v535, 1.0
  %v560 = vadd.f32 %v537, 1.0
  %v561 = vadd.f32 %v539, 1.0
  %v562 = vadd.f32 %v541, 1.0
  %v563 = vadd.f32 %v543, 1.0
  %v564 = vadd.f32 %v545, 1.0
  %v565 = vadd.f32 %v547, 1.0
  %v566 = vadd.f32 %v549, 1.0
  %v567 = vadd.f32 %v551, 1.0
  %v568 = vrcp.pop %v552
  %v569 = vmul.f32 1.0, %v568
  %v570 = vrcp.pop %v553
  %v571 = vmul.f32 1.0, %v570
  %v572 = vrcp.pop %v554
  %v573 = vmul.f32 1.0, %v572
  %v574 = vrcp.pop %v555
  %v575 = vmul.f32 1.0, %v574
  %v576 = vrcp.pop %v556
  %v577 = vmul.f32 1.0, %v576
  %v578 = vrcp.pop %v557
  %v579 = vmul.f32 1.0, %v578
  %v580 = vrcp.pop %v558
  %v581 = vmul.f32 1.0, %v580
  %v582 = vrcp.pop %v559
  %v583 = vmul.f32 1.0, %v582
  %v584 = vrcp.pop %v560
  %v585 = vmul.f32 1.0, %v584
  %v586 = vrcp.pop %v561
  %v587 = vmul.f32 1.0, %v586
  %v588 = vrcp.pop %v562
  %v589 = vmul.f32 1.0, %v588
  %v590 = vrcp.pop %v563
  %v591 = vmul.f32 1.0, %v590
  %v592 = vrcp.pop %v564
  %v593 = vmul.f32 1.0, %v592
  %v594 = vrcp.pop %v565
  %v595 = vmul.f32 1.0, %v594
  %v596 = vrcp.pop %v566
  %v597 = vmul.f32 1.0, %v596
  %v598 = vrcp.pop %v567
  %v599 = vmul.f32 1.0, %v598
  %v616 = vlaneseq
  %v617 = vand.u32 %v616, 127
  %v618 = vlaneseq
  %v619 = vshrl.u32 %v618, 7
  %v620 = vsub.s32 %v617, %v619
  %v621 = vrot.slane %v569, %v620
  %v622 = vadd.s32 %v617, 4294967288
  %v623 = vlaneseq
  %v624 = vshrl.u32 %v623, 7
  %v625 = vsub.s32 %v622, %v624
  %v626 = vrot.slane %v571, %v625
  %vm627 = vcmask 130112
  %v628 = vsel %vm627, %v626, %v621
  %v629 = vadd.s32 %v617, 4294967280
  %v630 = vlaneseq
  %v631 = vshrl.u32 %v630, 7
  %v632 = vsub.s32 %v629, %v631
  %v633 = vrot.slane %v573, %v632
  %vm634 = vcmask 195712
  %v635 = vsel %vm634, %v633, %v628
  %v636 = vadd.s32 %v617, 4294967272
  %v637 = vlaneseq
  %v638 = vshrl.u32 %v637, 7
  %v639 = vsub.s32 %v636, %v638
  %v640 = vrot.slane %v575, %v639
  %vm641 = vcmask 261312
  %v642 = vsel %vm641, %v640, %v635
  %v643 = vadd.s32 %v617, 4294967264
  %v644 = vlaneseq
  %v645 = vshrl.u32 %v644, 7
  %v646 = vsub.s32 %v643, %v645
  %v647 = vrot.slane %v577, %v646
  %vm648 = vcmask 326912
  %v649 = vsel %vm648, %v647, %v642
  %v650 = vadd.s32 %v617, 4294967256
  %v651 = vlaneseq
  %v652 = vshrl.u32 %v651, 7
  %v653 = vsub.s32 %v650, %v652
  %v654 = vrot.slane %v579, %v653
  %vm655 = vcmask 392512
  %v656 = vsel %vm655, %v654, %v649
  %v657 = vadd.s32 %v617, 4294967248
  %v658 = vlaneseq
  %v659 = vshrl.u32 %v658, 7
  %v660 = vsub.s32 %v657, %v659
  %v661 = vrot.slane %v581, %v660
  %vm662 = vcmask 458112
  %v663 = vsel %vm662, %v661, %v656
  %v664 = vadd.s32 %v617, 4294967240
  %v665 = vlaneseq
  %v666 = vshrl.u32 %v665, 7
  %v667 = vsub.s32 %v664, %v666
  %v668 = vrot.slane %v583, %v667
  %vm669 = vcmask 523712
  %v670 = vsel %vm669, %v668, %v663
  %v671 = vadd.s32 %v617, 4294967232
  %v672 = vlaneseq
  %v673 = vshrl.u32 %v672, 7
  %v674 = vsub.s32 %v671, %v673
  %v675 = vrot.slane %v585, %v674
  %vm676 = vcmask 589312
  %v677 = vsel %vm676, %v675, %v670
  %v678 = vadd.s32 %v617, 4294967224
  %v679 = vlaneseq
  %v680 = vshrl.u32 %v679, 7
  %v681 = vsub.s32 %v678, %v680
  %v682 = vrot.slane %v587, %v681
  %vm683 = vcmask 654912
  %v684 = vsel %vm683, %v682, %v677
  %v685 = vadd.s32 %v617, 4294967216
  %v686 = vlaneseq
  %v687 = vshrl.u32 %v686, 7
  %v688 = vsub.s32 %v685, %v687
  %v689 = vrot.slane %v589, %v688
  %vm690 = vcmask 720512
  %v691 = vsel %vm690, %v689, %v684
  %v692 = vadd.s32 %v617, 4294967208
  %v693 = vlaneseq
  %v694 = vshrl.u32 %v693, 7
  %v695 = vsub.s32 %v692, %v694
  %v696 = vrot.slane %v591, %v695
  %vm697 = vcmask 786112
  %v698 = vsel %vm697, %v696, %v691
  %v699 = vadd.s32 %v617, 4294967200
  %v700 = vlaneseq
  %v701 = vshrl.u32 %v700, 7
  %v702 = vsub.s32 %v699, %v701
  %v703 = vrot.slane %v593, %v702
  %vm704 = vcmask 851712
  %v705 = vsel %vm704, %v703, %v698
  %v706 = vadd.s32 %v617, 4294967192
  %v707 = vlaneseq
  %v708 = vshrl.u32 %v707, 7
  %v709 = vsub.s32 %v706, %v708
  %v710 = vrot.slane %v595, %v709
  %vm711 = vcmask 917312
  %v712 = vsel %vm711, %v710, %v705
  %v713 = vadd.s32 %v617, 4294967184
  %v714 = vlaneseq
  %v715 = vshrl.u32 %v714, 7
  %v716 = vsub.s32 %v713, %v715
  %v717 = vrot.slane %v597, %v716
  %vm718 = vcmask 982912
  %v719 = vsel %vm718, %v717, %v712
  %v720 = vadd.s32 %v617, 4294967176
  %v721 = vlaneseq
  %v722 = vshrl.u32 %v721, 7
  %v723 = vsub.s32 %v720, %v722
  %v724 = vrot.slane %v599, %v723
  %vm725 = vcmask 1048512
  %v726 = vsel %vm725, %v724, %v719
  %728 = vst [vmem:[%s7] sm:$0x1] %v726
  // Predicated region
  $region30: #{fake_news_classifier_forward.1} parent=0 // pred_check
    _
  $region31: #{fake_news_classifier_forward.1} parent=0 // pred_check_branch
    %730 = sbr.rel (0) target = $region33
  $region32: #{fake_news_classifier_forward.1} parent=0 // pred_region
    _
  $region33: #{fake_news_classifier_forward.1} parent=0 // pred_fallthru
    _
  // Predicated region
  $region34: #{fake_news_classifier_forward.1} parent=0 // pred_check
    _
  $region35: #{fake_news_classifier_forward.1} parent=0 // pred_check_branch
    %732 = sbr.rel (0) target = $region37
  $region36: #{fake_news_classifier_forward.1} parent=0 // pred_region
    _
  $region37: #{fake_news_classifier_forward.1} parent=0 // pred_fallthru
    _

</llo_original>
